<compile_context>
chip_gen: v5e
topology: v5e:2x2
jax: 0.10.0
libtpu: 0.0.40
codegen_flags: <defaults>
</compile_context>

<pallas_src>
import functools

import jax
import jax.numpy as jnp
from jax.experimental import pallas as pl
from jax.experimental.pallas import tpu as pltpu

EPS_CD = 1e-7     # concrete-dropout epsilon
TEMP_CD = 0.1     # concrete-dropout temperature
BN_EPS = 1e-5     # torch.nn.BatchNorm1d default eps


def _pool_dropout_cheb(x_ref, u_ref, lap_ref, w_ref, b_ref, cd_ref,
                       *, K, pool, Bt, Cin, mm):
    """Shared front half: MaxPool -> concrete dropout -> Chebyshev conv.

    x_ref  : (pool, Vp, Bt*Cin)  pooling window is the leading dim
    u_ref  : (Vp, Bt*Cin)        uniform noise for concrete dropout
    lap_ref: (Vp, Vp)            dense (rescaled) graph Laplacian
    w_ref  : (K*Cin, Cout)       Chebyshev weights, flattened over k
    b_ref  : (1, Cout)           bias
    cd_ref : SMEM (2,)           [log(p+eps)-log(1-p+eps), 1/(1-p)]
    Returns y of shape (Bt*Vp, Cout), f32.
    """
    # --- MaxPool1d over vertices (window = pool) ----------------------------
    pooled = x_ref[0]
    for p in range(1, pool):
        pooled = jnp.maximum(pooled, x_ref[p])               # (Vp, Bt*Cin)

    # --- concrete dropout ----------------------------------------------------
    dlogit = cd_ref[0]
    inv_retain = cd_ref[1]
    u = u_ref[...]
    # single log of the ratio instead of log(u+eps) - log(1-u+eps)
    noise = jnp.log((u + EPS_CD) / (1.0 - u + EPS_CD))
    drop = jax.nn.sigmoid((dlogit + noise) * (1.0 / TEMP_CD))
    x0 = pooled * ((1.0 - drop) * inv_retain)                # (Vp, Bt*Cin)

    # --- Chebyshev recurrence: batch packed into the MXU N dimension ---------
    L = lap_ref[...]
    xs = [x0]
    if K > 1:
        x1 = mm(L, x0)
        xs.append(x1)
        xkm1, xk = x0, x1
        for _ in range(2, K):
            xkp1 = 2.0 * mm(L, xk) - xkm1
            xs.append(xkp1)
            xkm1, xk = xk, xkp1

    # --- single fused weight contraction --------------------------------------
    # row-stack batches, lane-concat Chebyshev orders:
    #   xcat[b*Vp + v, k*Cin + c] = xs[k][v, b*Cin + c]
    # => one (Bt*Vp, K*Cin) @ (K*Cin, Cout) MXU matmul for the whole tile.
    xcat = jnp.concatenate(
        [jnp.concatenate([xk[:, b * Cin:(b + 1) * Cin] for xk in xs], axis=-1)
         for b in range(Bt)], axis=0)                        # (Bt*Vp, K*Cin)
    return mm(xcat, w_ref[...]) + b_ref[...]                 # (Bt*Vp, Cout)


def _make_fused_kernel(K, pool, B, Cin, matmul_dtype):
    """Single-pass kernel: conv + in-register BatchNorm(train) + ReLU."""

    def mm(a, b):
        return jnp.dot(a.astype(matmul_dtype), b.astype(matmul_dtype),
                       preferred_element_type=jnp.float32)

    def kernel(x_ref, u_ref, lap_ref, w_ref, b_ref, bn_ref, cd_ref, o_ref):
        y = _pool_dropout_cheb(x_ref, u_ref, lap_ref, w_ref, b_ref, cd_ref,
                               K=K, pool=pool, Bt=B, Cin=Cin, mm=mm)
        # --- BatchNorm (training: biased stats over batch*vertices) ----------
        # NOTE: E[x^2]-E[x]^2 in f32 can cancel for large-mean activations;
        # fine at these scales.
        inv_n = 1.0 / float(y.shape[0])
        mean = jnp.sum(y, axis=0, keepdims=True) * inv_n          # (1, Cout)
        var = jnp.sum(y * y, axis=0, keepdims=True) * inv_n - mean * mean
        bn = bn_ref[...]                                           # (2, Cout)
        scale = bn[0:1] * jax.lax.rsqrt(var + BN_EPS)              # gamma/std
        shift = bn[1:2] - mean * scale                             # beta-μ·s
        o_ref[...] = jnp.maximum(y * scale + shift, 0.0)

    return kernel


def _make_tiled_kernel(K, pool, Bt, Cin, matmul_dtype):
    """Per-batch-tile kernel: conv output + BN partial sums (two-pass path)."""

    def mm(a, b):
        return jnp.dot(a.astype(matmul_dtype), b.astype(matmul_dtype),
                       preferred_element_type=jnp.float32)

    def kernel(x_ref, u_ref, lap_ref, w_ref, b_ref, cd_ref,
               y_ref, sum_ref, sq_ref):
        y = _pool_dropout_cheb(x_ref, u_ref, lap_ref, w_ref, b_ref, cd_ref,
                               K=K, pool=pool, Bt=Bt, Cin=Cin, mm=mm)
        y_ref[...] = y
        sum_ref[0] = jnp.sum(y, axis=0, keepdims=True)
        sq_ref[0] = jnp.sum(y * y, axis=0, keepdims=True)

    return kernel


def _bn_relu_kernel(y_ref, scale_ref, shift_ref, o_ref):
    # y_ref/o_ref: (Bt*Vp, Cout); scale/shift: (1, Cout); written in place
    o_ref[...] = jnp.maximum(y_ref[...] * scale_ref[...] + shift_ref[...], 0.0)


def bayesian_spherical_cheb_bn_pool(x, lap, weight, bias, p_logit, gamma, beta,
                                    u_noise, *, pool_size=4, batch_tile=None,
                                    matmul_dtype=jnp.float32):
    """Full forward pass. x: [B, Vin, Cin] float32 -> [B, Vin/pool, Cout]."""
    B, Vin, Cin = x.shape
    K, _, Cout = weight.shape
    Vp = Vin // pool_size
    Bt = B if batch_tile is None else min(batch_tile, B)
    assert B % Bt == 0, "batch_tile must divide batch"
    nb = B // Bt

    # --- layout plumbing (wrapper-side reshapes/transposes only) -------------
    # pooling window leading, batch folded into the lane dim
    x3 = (x.reshape(B, Vp, pool_size, Cin)
            .transpose(2, 1, 0, 3)
            .reshape(pool_size, Vp, B * Cin))
    u2 = u_noise.transpose(1, 0, 2).reshape(Vp, B * Cin)
    wflat = weight.reshape(K * Cin, Cout).astype(jnp.float32)
    b2 = bias.reshape(1, Cout).astype(jnp.float32)

    # scalar dropout constants for SMEM transport
    p = jax.nn.sigmoid(p_logit)
    cd = jnp.stack([jnp.log(p + EPS_CD) - jnp.log(1.0 - p + EPS_CD),
                    1.0 / (1.0 - p)]).astype(jnp.float32)

    if nb == 1:
        # ---- fully fused single pass: no HBM round-trip of the conv output --
        bn2 = jnp.stack([gamma, beta]).astype(jnp.float32)         # (2, Cout)
        kernel = _make_fused_kernel(K, pool_size, B, Cin, matmul_dtype)
        y = pl.pallas_call(
            kernel,
            grid=(1,),
            in_specs=[
                pl.BlockSpec((pool_size, Vp, B * Cin), lambda i: (0, 0, 0)),
                pl.BlockSpec((Vp, B * Cin), lambda i: (0, 0)),
                pl.BlockSpec((Vp, Vp), lambda i: (0, 0)),
                pl.BlockSpec((K * Cin, Cout), lambda i: (0, 0)),
                pl.BlockSpec((1, Cout), lambda i: (0, 0)),
                pl.BlockSpec((2, Cout), lambda i: (0, 0)),
                pl.BlockSpec(memory_space=pltpu.MemorySpace.SMEM),
            ],
            out_specs=pl.BlockSpec((B * Vp, Cout), lambda i: (0, 0)),
            out_shape=jax.ShapeDtypeStruct((B * Vp, Cout), jnp.float32),
        )(x3, u2, lap, wflat, b2, bn2, cd)
        return y.reshape(B, Vp, Cout)

    # ---- two-pass path for batch tiling (BN stats need all tiles) ----------
    assert (Bt * Cin) % 128 == 0 and (Bt * Vp) % 8 == 0, (
        "batch tiling needs lane/sublane-aligned tiles; use batch_tile=None")
    kernel = _make_tiled_kernel(K, pool_size, Bt, Cin, matmul_dtype)
    y, ssum, ssq = pl.pallas_call(
        kernel,
        grid=(nb,),
        in_specs=[
            pl.BlockSpec((pool_size, Vp, Bt * Cin), lambda bt: (0, 0, bt)),
            pl.BlockSpec((Vp, Bt * Cin), lambda bt: (0, bt)),
            # constant-index blocks (Laplacian / weights / bias)
            pl.BlockSpec((Vp, Vp), lambda bt: (0, 0)),
            pl.BlockSpec((K * Cin, Cout), lambda bt: (0, 0)),
            pl.BlockSpec((1, Cout), lambda bt: (0, 0)),
            pl.BlockSpec(memory_space=pltpu.MemorySpace.SMEM),
        ],
        out_specs=[
            pl.BlockSpec((Bt * Vp, Cout), lambda bt: (bt, 0)),
            pl.BlockSpec((1, 1, Cout), lambda bt: (bt, 0, 0)),
            pl.BlockSpec((1, 1, Cout), lambda bt: (bt, 0, 0)),
        ],
        out_shape=[
            jax.ShapeDtypeStruct((B * Vp, Cout), jnp.float32),
            jax.ShapeDtypeStruct((nb, 1, Cout), jnp.float32),
            jax.ShapeDtypeStruct((nb, 1, Cout), jnp.float32),
        ],
        compiler_params=pltpu.CompilerParams(
            dimension_semantics=("parallel",)),
    )(x3, u2, lap, wflat, b2, cd)

    n = B * Vp
    mean = jnp.sum(ssum[:, 0, :], axis=0) / n
    var = jnp.sum(ssq[:, 0, :], axis=0) / n - mean * mean
    scale = (gamma * jax.lax.rsqrt(var + BN_EPS)).astype(jnp.float32)
    shift = (beta - mean * scale).astype(jnp.float32)

    y_bn = pl.pallas_call(
        _bn_relu_kernel,
        grid=(nb,),
        in_specs=[
            pl.BlockSpec((Bt * Vp, Cout), lambda bt: (bt, 0)),
            pl.BlockSpec((1, Cout), lambda bt: (0, 0)),
            pl.BlockSpec((1, Cout), lambda bt: (0, 0)),
        ],
        out_specs=pl.BlockSpec((Bt * Vp, Cout), lambda bt: (bt, 0)),
        out_shape=jax.ShapeDtypeStruct((B * Vp, Cout), jnp.float32),
        input_output_aliases={0: 0},
        compiler_params=pltpu.CompilerParams(
            dimension_semantics=("parallel",)),
    )(y, scale.reshape(1, Cout), shift.reshape(1, Cout))
    return y_bn.reshape(B, Vp, Cout)


def _reference(x, lap, weight, bias, p_logit, gamma, beta, u_noise, pool_size=4):
    """Pure-JAX reference of the same forward pass (HIGHEST precision)."""
    B, Vin, Cin = x.shape
    K, _, Cout = weight.shape
    Vp = Vin // pool_size
    pooled = jnp.max(x.reshape(B, Vp, pool_size, Cin), axis=2)
    p = jax.nn.sigmoid(p_logit)
    drop = jax.nn.sigmoid((jnp.log(p + EPS_CD) - jnp.log(1.0 - p + EPS_CD)
                           + jnp.log(u_noise + EPS_CD)
                           - jnp.log(1.0 - u_noise + EPS_CD)) / TEMP_CD)
    xd = pooled * (1.0 - drop) / (1.0 - p)
    hi = jax.lax.Precision.HIGHEST
    x0 = xd
    out = jnp.einsum("bvc,co->bvo", x0, weight[0], precision=hi)
    x1 = jnp.einsum("uv,bvc->buc", lap, x0, precision=hi)
    out = out + jnp.einsum("bvc,co->bvo", x1, weight[1], precision=hi)
    for k in range(2, K):
        x2 = 2.0 * jnp.einsum("uv,bvc->buc", lap, x1, precision=hi) - x0
        out = out + jnp.einsum("bvc,co->bvo", x2, weight[k], precision=hi)
        x0, x1 = x1, x2
    out = out + bias
    mean = out.mean(axis=(0, 1))
    var = out.var(axis=(0, 1))
    yn = (out - mean) / jnp.sqrt(var + BN_EPS) * gamma + beta
    return jnp.maximum(yn, 0.0)


if __name__ == "__main__":
    B, Vin, Cin, Cout, K, POOL = 2, 64, 4, 8, 3, 4
    Vp = Vin // POOL

    key = jax.random.PRNGKey(0)
    k_x, k_u, k_w = jax.random.split(key, 3)

    x = jax.random.normal(k_x, (B, Vin, Cin), dtype=jnp.float32)
    u_noise = jax.random.uniform(k_u, (B, Vp, Cin), dtype=jnp.float32,
                                 minval=1e-4, maxval=1.0 - 1e-4)

    # deterministic parameters (shapes implied by ChebConv(Cin, Cout, K) + BN)
    weight = (jax.random.normal(k_w, (K, Cin, Cout), dtype=jnp.float32)
              * (1.0 / jnp.sqrt(float(Cin * K))))
    bias = jnp.zeros((Cout,), dtype=jnp.float32)
    p_logit = jnp.float32(jnp.log(0.1) - jnp.log(0.9))   # concrete-dropout p≈0.1
    gamma = jnp.ones((Cout,), dtype=jnp.float32)          # BN weight
    beta = jnp.zeros((Cout,), dtype=jnp.float32)          # BN bias

    # deterministic dense rescaled Laplacian of a ring graph on Vp vertices
    idx = jnp.arange(Vp)
    diff = jnp.abs(idx[:, None] - idx[None, :])
    adj = ((diff == 1) | (diff == Vp - 1)).astype(jnp.float32)
    lap = -0.5 * adj    # normalized ring Laplacian rescaled to [-1, 1]

    fwd = jax.jit(functools.partial(bayesian_spherical_cheb_bn_pool,
                                    pool_size=POOL))
    out = fwd(x, lap, weight, bias, p_logit, gamma, beta, u_noise)
    out = jax.block_until_ready(out)

    ref = _reference(x, lap, weight, bias, p_logit, gamma, beta, u_noise,
                     pool_size=POOL)
    assert out.shape == (B, Vp, Cout)
    assert jnp.allclose(out, ref, rtol=1e-3, atol=1e-3), (
        f"max abs err {jnp.max(jnp.abs(out - ref))}")
    print("KERNEL_OK")
</pallas_src>

<mosaic_0001>
module attributes {stable_mosaic.version = 11 : i64} {
  func.func @kernel(%arg0: i32, %arg1: memref<4x16x8xf32, #tpu.memory_space<vmem>>, %arg2: memref<16x8xf32, #tpu.memory_space<vmem>>, %arg3: memref<16x16xf32, #tpu.memory_space<vmem>>, %arg4: memref<12x8xf32, #tpu.memory_space<vmem>>, %arg5: memref<1x8xf32, #tpu.memory_space<vmem>>, %arg6: memref<2x8xf32, #tpu.memory_space<vmem>>, %arg7: memref<2xf32, #tpu.memory_space<smem>>, %arg8: memref<32x8xf32, #tpu.memory_space<vmem>>) attributes {dimension_semantics = [#tpu.dimension_semantics<arbitrary>], iteration_bounds = array<i64: 1>, scalar_prefetch = 0 : i64, scratch_operands = 0 : i64, tpu.core_type = #tpu.core_type<tc>, window_params = [{pipeline_mode = #tpu.pipeline_mode<synchronous>, transform_indices = @transform_0, window_bounds = array<i64: 4, 16, 8>}, {pipeline_mode = #tpu.pipeline_mode<synchronous>, transform_indices = @transform_1, window_bounds = array<i64: 16, 8>}, {pipeline_mode = #tpu.pipeline_mode<synchronous>, transform_indices = @transform_2, window_bounds = array<i64: 16, 16>}, {pipeline_mode = #tpu.pipeline_mode<synchronous>, transform_indices = @transform_3, window_bounds = array<i64: 12, 8>}, {pipeline_mode = #tpu.pipeline_mode<synchronous>, transform_indices = @transform_4, window_bounds = array<i64: 1, 8>}, {pipeline_mode = #tpu.pipeline_mode<synchronous>, transform_indices = @transform_5, window_bounds = array<i64: 2, 8>}, {transform_indices = @transform_6, window_bounds = array<i64: 2>}, {pipeline_mode = #tpu.pipeline_mode<synchronous>, transform_indices = @transform_7, window_bounds = array<i64: 32, 8>}]} {
    %c0 = arith.constant 0 : index
    %c0_0 = arith.constant 0 : index
    %c0_1 = arith.constant 0 : index
    %0 = vector.load %arg1[%c0, %c0_0, %c0_1] : memref<4x16x8xf32, #tpu.memory_space<vmem>>, vector<1x16x8xf32>
    %1 = vector.shape_cast %0 : vector<1x16x8xf32> to vector<16x8xf32>
    %c1 = arith.constant 1 : index
    %c0_2 = arith.constant 0 : index
    %c0_3 = arith.constant 0 : index
    %2 = vector.load %arg1[%c1, %c0_2, %c0_3] : memref<4x16x8xf32, #tpu.memory_space<vmem>>, vector<1x16x8xf32>
    %3 = vector.shape_cast %2 : vector<1x16x8xf32> to vector<16x8xf32>
    %4 = arith.maximumf %1, %3 : vector<16x8xf32>
    %c2 = arith.constant 2 : index
    %c0_4 = arith.constant 0 : index
    %c0_5 = arith.constant 0 : index
    %5 = vector.load %arg1[%c2, %c0_4, %c0_5] : memref<4x16x8xf32, #tpu.memory_space<vmem>>, vector<1x16x8xf32>
    %6 = vector.shape_cast %5 : vector<1x16x8xf32> to vector<16x8xf32>
    %7 = arith.maximumf %4, %6 : vector<16x8xf32>
    %c3 = arith.constant 3 : index
    %c0_6 = arith.constant 0 : index
    %c0_7 = arith.constant 0 : index
    %8 = vector.load %arg1[%c3, %c0_6, %c0_7] : memref<4x16x8xf32, #tpu.memory_space<vmem>>, vector<1x16x8xf32>
    %9 = vector.shape_cast %8 : vector<1x16x8xf32> to vector<16x8xf32>
    %10 = arith.maximumf %7, %9 : vector<16x8xf32>
    %c0_8 = arith.constant 0 : index
    %11 = memref.load %arg7[%c0_8] : memref<2xf32, #tpu.memory_space<smem>>
    %c1_9 = arith.constant 1 : index
    %12 = memref.load %arg7[%c1_9] : memref<2xf32, #tpu.memory_space<smem>>
    %c0_10 = arith.constant 0 : index
    %c0_11 = arith.constant 0 : index
    %13 = vector.load %arg2[%c0_10, %c0_11] : memref<16x8xf32, #tpu.memory_space<vmem>>, vector<16x8xf32>
    %cst = arith.constant 1.000000e-07 : f32
    %14 = vector.broadcast %cst : f32 to vector<16x8xf32>
    %15 = arith.addf %13, %14 : vector<16x8xf32>
    %cst_12 = arith.constant 1.000000e+00 : f32
    %16 = vector.broadcast %cst_12 : f32 to vector<16x8xf32>
    %17 = arith.subf %16, %13 : vector<16x8xf32>
    %cst_13 = arith.constant 1.000000e-07 : f32
    %18 = vector.broadcast %cst_13 : f32 to vector<16x8xf32>
    %19 = arith.addf %17, %18 : vector<16x8xf32>
    %20 = arith.divf %15, %19 : vector<16x8xf32>
    %21 = math.log %20 : vector<16x8xf32>
    %22 = vector.broadcast %11 : f32 to vector<16x8xf32>
    %23 = arith.addf %22, %21 : vector<16x8xf32>
    %cst_14 = arith.constant 1.000000e+01 : f32
    %24 = vector.broadcast %cst_14 : f32 to vector<16x8xf32>
    %25 = arith.mulf %23, %24 : vector<16x8xf32>
    %26 = arith.negf %25 : vector<16x8xf32>
    %27 = math.exp %26 : vector<16x8xf32>
    %cst_15 = arith.constant 1.000000e+00 : f32
    %28 = vector.broadcast %cst_15 : f32 to vector<16x8xf32>
    %29 = arith.addf %28, %27 : vector<16x8xf32>
    %30 = arith.divf %28, %29 : vector<16x8xf32>
    %cst_16 = arith.constant 1.000000e+00 : f32
    %31 = vector.broadcast %cst_16 : f32 to vector<16x8xf32>
    %32 = arith.subf %31, %30 : vector<16x8xf32>
    %33 = vector.broadcast %12 : f32 to vector<16x8xf32>
    %34 = arith.mulf %32, %33 : vector<16x8xf32>
    %35 = arith.mulf %10, %34 : vector<16x8xf32>
    %c0_17 = arith.constant 0 : index
    %c0_18 = arith.constant 0 : index
    %36 = vector.load %arg3[%c0_17, %c0_18] : memref<16x16xf32, #tpu.memory_space<vmem>>, vector<16x16xf32>
    %cst_19 = arith.constant dense<0.000000e+00> : vector<16x8xf32>
    %37 = tpu.matmul %36, %35, %cst_19 {dimension_numbers = #tpu.dot_dimension_numbers<[1], [0], [0], [1], [0, 0, 1, 1], [], []>} : vector<16x16xf32>, vector<16x8xf32>, vector<16x8xf32> -> vector<16x8xf32>
    %cst_20 = arith.constant dense<0.000000e+00> : vector<16x8xf32>
    %38 = tpu.matmul %36, %37, %cst_20 {dimension_numbers = #tpu.dot_dimension_numbers<[1], [0], [0], [1], [0, 0, 1, 1], [], []>} : vector<16x16xf32>, vector<16x8xf32>, vector<16x8xf32> -> vector<16x8xf32>
    %cst_21 = arith.constant 2.000000e+00 : f32
    %39 = vector.broadcast %cst_21 : f32 to vector<16x8xf32>
    %40 = arith.mulf %39, %38 : vector<16x8xf32>
    %41 = arith.subf %40, %35 : vector<16x8xf32>
    %42 = vector.extract_strided_slice %35 {offsets = [0, 0], sizes = [16, 4], strides = [1, 1]} : vector<16x8xf32> to vector<16x4xf32>
    %43 = vector.extract_strided_slice %37 {offsets = [0, 0], sizes = [16, 4], strides = [1, 1]} : vector<16x8xf32> to vector<16x4xf32>
    %44 = vector.extract_strided_slice %41 {offsets = [0, 0], sizes = [16, 4], strides = [1, 1]} : vector<16x8xf32> to vector<16x4xf32>
    %45 = tpu.concatenate %42, %43, %44 in 1 : vector<16x4xf32>, vector<16x4xf32>, vector<16x4xf32> -> vector<16x12xf32>
    %46 = vector.extract_strided_slice %35 {offsets = [0, 4], sizes = [16, 4], strides = [1, 1]} : vector<16x8xf32> to vector<16x4xf32>
    %47 = vector.extract_strided_slice %37 {offsets = [0, 4], sizes = [16, 4], strides = [1, 1]} : vector<16x8xf32> to vector<16x4xf32>
    %48 = vector.extract_strided_slice %41 {offsets = [0, 4], sizes = [16, 4], strides = [1, 1]} : vector<16x8xf32> to vector<16x4xf32>
    %49 = tpu.concatenate %46, %47, %48 in 1 : vector<16x4xf32>, vector<16x4xf32>, vector<16x4xf32> -> vector<16x12xf32>
    %50 = tpu.concatenate %45, %49 in 0 : vector<16x12xf32>, vector<16x12xf32> -> vector<32x12xf32>
    %c0_22 = arith.constant 0 : index
    %c0_23 = arith.constant 0 : index
    %51 = vector.load %arg4[%c0_22, %c0_23] : memref<12x8xf32, #tpu.memory_space<vmem>>, vector<12x8xf32>
    %cst_24 = arith.constant dense<0.000000e+00> : vector<32x8xf32>
    %52 = tpu.matmul %50, %51, %cst_24 {dimension_numbers = #tpu.dot_dimension_numbers<[1], [0], [0], [1], [0, 0, 1, 1], [], []>} : vector<32x12xf32>, vector<12x8xf32>, vector<32x8xf32> -> vector<32x8xf32>
    %c0_25 = arith.constant 0 : index
    %c0_26 = arith.constant 0 : index
    %53 = vector.load %arg5[%c0_25, %c0_26] : memref<1x8xf32, #tpu.memory_space<vmem>>, vector<1x8xf32>
    %54 = vector.broadcast %53 : vector<1x8xf32> to vector<32x8xf32>
    %55 = arith.addf %52, %54 : vector<32x8xf32>
    %cst_27 = arith.constant dense<0.000000e+00> : vector<8xf32>
    %56 = vector.multi_reduction <add>, %55, %cst_27 [0] : vector<32x8xf32> to vector<8xf32>
    %57 = vector.shape_cast %56 : vector<8xf32> to vector<1x8xf32>
    %cst_28 = arith.constant 3.125000e-02 : f32
    %58 = vector.broadcast %cst_28 : f32 to vector<1x8xf32>
    %59 = arith.mulf %57, %58 : vector<1x8xf32>
    %60 = arith.mulf %55, %55 : vector<32x8xf32>
    %cst_29 = arith.constant dense<0.000000e+00> : vector<8xf32>
    %61 = vector.multi_reduction <add>, %60, %cst_29 [0] : vector<32x8xf32> to vector<8xf32>
    %62 = vector.shape_cast %61 : vector<8xf32> to vector<1x8xf32>
    %cst_30 = arith.constant 3.125000e-02 : f32
    %63 = vector.broadcast %cst_30 : f32 to vector<1x8xf32>
    %64 = arith.mulf %62, %63 : vector<1x8xf32>
    %65 = arith.mulf %59, %59 : vector<1x8xf32>
    %66 = arith.subf %64, %65 : vector<1x8xf32>
    %c0_31 = arith.constant 0 : index
    %c0_32 = arith.constant 0 : index
    %67 = vector.load %arg6[%c0_31, %c0_32] : memref<2x8xf32, #tpu.memory_space<vmem>>, vector<2x8xf32>
    %68 = vector.extract_strided_slice %67 {offsets = [0, 0], sizes = [1, 8], strides = [1, 1]} : vector<2x8xf32> to vector<1x8xf32>
    %cst_33 = arith.constant 9.99999974E-6 : f32
    %69 = vector.broadcast %cst_33 : f32 to vector<1x8xf32>
    %70 = arith.addf %66, %69 : vector<1x8xf32>
    %71 = math.rsqrt %70 : vector<1x8xf32>
    %72 = arith.mulf %68, %71 : vector<1x8xf32>
    %73 = vector.extract_strided_slice %67 {offsets = [1, 0], sizes = [1, 8], strides = [1, 1]} : vector<2x8xf32> to vector<1x8xf32>
    %74 = arith.mulf %59, %72 : vector<1x8xf32>
    %75 = arith.subf %73, %74 : vector<1x8xf32>
    %76 = vector.broadcast %72 : vector<1x8xf32> to vector<32x8xf32>
    %77 = arith.mulf %55, %76 : vector<32x8xf32>
    %78 = vector.broadcast %75 : vector<1x8xf32> to vector<32x8xf32>
    %79 = arith.addf %77, %78 : vector<32x8xf32>
    %cst_34 = arith.constant 0.000000e+00 : f32
    %80 = vector.broadcast %cst_34 : f32 to vector<32x8xf32>
    %81 = arith.maximumf %79, %80 : vector<32x8xf32>
    %c0_35 = arith.constant 0 : index
    %c0_36 = arith.constant 0 : index
    %82 = vector.load %arg8[%c0_35, %c0_36] : memref<32x8xf32, #tpu.memory_space<vmem>>, vector<32x8xf32>
    tpu.vector_store %arg8[%c0_35, %c0_36], %81 {strides = array<i32>} : memref<32x8xf32, #tpu.memory_space<vmem>>, vector<32x8xf32>,
    return
  }
  func.func @transform_0(%arg0: i32) -> (i32, i32, i32) {
    %c0_i32 = arith.constant 0 : i32
    %c0_i32_0 = arith.constant 0 : i32
    %c0_i32_1 = arith.constant 0 : i32
    %c0_i32_2 = arith.constant 0 : i32
    return %c0_i32, %c0_i32_0, %c0_i32_1 : i32, i32, i32
  }
  func.func @transform_1(%arg0: i32) -> (i32, i32) {
    %c0_i32 = arith.constant 0 : i32
    %c0_i32_0 = arith.constant 0 : i32
    %c0_i32_1 = arith.constant 0 : i32
    return %c0_i32, %c0_i32_0 : i32, i32
  }
  func.func @transform_2(%arg0: i32) -> (i32, i32) {
    %c0_i32 = arith.constant 0 : i32
    %c0_i32_0 = arith.constant 0 : i32
    %c0_i32_1 = arith.constant 0 : i32
    return %c0_i32, %c0_i32_0 : i32, i32
  }
  func.func @transform_3(%arg0: i32) -> (i32, i32) {
    %c0_i32 = arith.constant 0 : i32
    %c0_i32_0 = arith.constant 0 : i32
    %c0_i32_1 = arith.constant 0 : i32
    return %c0_i32, %c0_i32_0 : i32, i32
  }
  func.func @transform_4(%arg0: i32) -> (i32, i32) {
    %c0_i32 = arith.constant 0 : i32
    %c0_i32_0 = arith.constant 0 : i32
    %c0_i32_1 = arith.constant 0 : i32
    return %c0_i32, %c0_i32_0 : i32, i32
  }
  func.func @transform_5(%arg0: i32) -> (i32, i32) {
    %c0_i32 = arith.constant 0 : i32
    %c0_i32_0 = arith.constant 0 : i32
    %c0_i32_1 = arith.constant 0 : i32
    return %c0_i32, %c0_i32_0 : i32, i32
  }
  func.func @transform_6(%arg0: i32) -> i32 {
    %c0_i32 = arith.constant 0 : i32
    %c0_i32_0 = arith.constant 0 : i32
    return %c0_i32 : i32
  }
  func.func @transform_7(%arg0: i32) -> (i32, i32) {
    %c0_i32 = arith.constant 0 : i32
    %c0_i32_0 = arith.constant 0 : i32
    %c0_i32_1 = arith.constant 0 : i32
    return %c0_i32, %c0_i32_0 : i32, i32
  }
}

</mosaic_0001>

<llo_original>
// kernel: bayesian_spherical_cheb_bn_pool.1
$region0: #{bayesian_spherical_cheb_bn_pool.1}
  #allocation0 [shape = 'u32[]', space=smem, size = 0x4, offset = 0x4, fixed_abs, tag = 'smem constant byte address 0x4 - core index']
  #allocation1 [shape = 'u32[72,128]{1,0:T(1,128)}', space=vmem, size = 0x9000, scoped, tag = 'internal scratch']
  %s0 = inlined_call_operand.vmem [shape: f32[4,16,8], index: 0, kind: input, shape index: {}]
  %s1 = inlined_call_operand.vmem [shape: f32[16,8], index: 1, kind: input, shape index: {}]
  %s2 = inlined_call_operand.vmem [shape: f32[16,16], index: 2, kind: input, shape index: {}]
  %s3 = inlined_call_operand.vmem [shape: f32[12,8], index: 3, kind: input, shape index: {}]
  %s4 = inlined_call_operand.vmem [shape: f32[1,8], index: 4, kind: input, shape index: {}]
  %s5 = inlined_call_operand.vmem [shape: f32[2,8], index: 5, kind: input, shape index: {}]
  %s6 = inlined_call_operand.vmem [shape: f32[2], index: 6, kind: input, shape index: {}]
  %s7 = inlined_call_operand.vmem [shape: f32[32,8], index: 7, kind: output, shape index: {}]
  %s8 = sld [smem:[#allocation0]]
  $region42: #{bayesian_spherical_cheb_bn_pool.1} parent=0
    _
  %s10 = ssub.s32 1, %s8
  %s11 = scalar_select 0, %s10, %s8
  $region1: #{bayesian_spherical_cheb_bn_pool.1} parent=0
    #allocation2 [shape = 'u8[512]{0}', space=smem, size = 0x200, scoped, tag = 'input window, operand 6, single buffered']
    #allocation3 [shape = 's32[1]{0}', space=sflag, size = 0x4, scoped, tag = 'scoped memory for bayesian_spherical_cheb_bn_pool.1']
    %12 = vsyncpa [#allocation3], 0
    // Predicated region
    $region2: #{bayesian_spherical_cheb_bn_pool.1} parent=1 // pred_check
      _
    $region3: #{bayesian_spherical_cheb_bn_pool.1} parent=1 // pred_check_branch
      %14 = sbr.rel (0) target = $region5
    $region4: #{bayesian_spherical_cheb_bn_pool.1} parent=1 // pred_region
      _
    $region5: #{bayesian_spherical_cheb_bn_pool.1} parent=1 // pred_fallthru
      _
    // Predicated region
    $region6: #{bayesian_spherical_cheb_bn_pool.1} parent=1 // pred_check
      _
    $region7: #{bayesian_spherical_cheb_bn_pool.1} parent=1 // pred_check_branch
      %16 = sbr.rel (0) target = $region9
    $region8: #{bayesian_spherical_cheb_bn_pool.1} parent=1 // pred_region
      _
    $region9: #{bayesian_spherical_cheb_bn_pool.1} parent=1 // pred_fallthru
      _
    // Predicated region
    $region10: #{bayesian_spherical_cheb_bn_pool.1} parent=1 // pred_check
      _
    $region11: #{bayesian_spherical_cheb_bn_pool.1} parent=1 // pred_check_branch
      %18 = sbr.rel (0) target = $region13
    $region12: #{bayesian_spherical_cheb_bn_pool.1} parent=1 // pred_region
      _
    $region13: #{bayesian_spherical_cheb_bn_pool.1} parent=1 // pred_fallthru
      _
    // Predicated region
    $region14: #{bayesian_spherical_cheb_bn_pool.1} parent=1 // pred_check
      _
    $region15: #{bayesian_spherical_cheb_bn_pool.1} parent=1 // pred_check_branch
      %20 = sbr.rel (0) target = $region17
    $region16: #{bayesian_spherical_cheb_bn_pool.1} parent=1 // pred_region
      _
    $region17: #{bayesian_spherical_cheb_bn_pool.1} parent=1 // pred_fallthru
      _
    // Predicated region
    $region18: #{bayesian_spherical_cheb_bn_pool.1} parent=1 // pred_check
      _
    $region19: #{bayesian_spherical_cheb_bn_pool.1} parent=1 // pred_check_branch
      %22 = sbr.rel (0) target = $region21
    $region20: #{bayesian_spherical_cheb_bn_pool.1} parent=1 // pred_region
      _
    $region21: #{bayesian_spherical_cheb_bn_pool.1} parent=1 // pred_fallthru
      _
    // Predicated region
    $region22: #{bayesian_spherical_cheb_bn_pool.1} parent=1 // pred_check
      _
    $region23: #{bayesian_spherical_cheb_bn_pool.1} parent=1 // pred_check_branch
      %24 = sbr.rel (0) target = $region25
    $region24: #{bayesian_spherical_cheb_bn_pool.1} parent=1 // pred_region
      _
    $region25: #{bayesian_spherical_cheb_bn_pool.1} parent=1 // pred_fallthru
      _
    // Predicated region
    $region26: #{bayesian_spherical_cheb_bn_pool.1} parent=1 // pred_check
      _
    $region27: #{bayesian_spherical_cheb_bn_pool.1} parent=1 // pred_check_branch
      %26 = sbr.rel (0) target = $region29
    $region28: #{bayesian_spherical_cheb_bn_pool.1} parent=1 // pred_region
      %28 = vsyncadd [#allocation3], 0
      %s30 = sshll.u32 %s6, 4
      %s31 = int_to_ptr.vmem [resolvable:$true] %s30
      %33 = dma.vmem_to_smem %s31, 16, [#allocation2], [#allocation3]
    $region29: #{bayesian_spherical_cheb_bn_pool.1} parent=1 // pred_fallthru
      _
    // Predicated region
    $region30: #{bayesian_spherical_cheb_bn_pool.1} parent=1 // pred_check
      _
    $region31: #{bayesian_spherical_cheb_bn_pool.1} parent=1 // pred_check_branch
      %35 = sbr.rel (0) target = $region33
    $region32: #{bayesian_spherical_cheb_bn_pool.1} parent=1 // pred_region
      %37 = dma.done [#allocation3], 16
    $region33: #{bayesian_spherical_cheb_bn_pool.1} parent=1 // pred_fallthru
      _
    %38 = sfence
    %v39 = vld [vmem:[%s0] sm:$0xff]
    %v40 = vld [vmem:[%s0 + $0x8] sm:$0xff]
    %s41 = scalar_lea.vmem %s0, 16
    %v42 = vld [vmem:[%s41] sm:$0xff]
    %v43 = vld [vmem:[%s41 + $0x8] sm:$0xff]
    %v44 = vmax.f32 %v39, %v42
    %v45 = vmax.f32 %v40, %v43
    %s46 = scalar_lea.vmem %s0, 32
    %v47 = vld [vmem:[%s46] sm:$0xff]
    %v48 = vld [vmem:[%s46 + $0x8] sm:$0xff]
    %v49 = vmax.f32 %v44, %v47
    %v50 = vmax.f32 %v45, %v48
    %s51 = scalar_lea.vmem %s0, 48
    %v52 = vld [vmem:[%s51] sm:$0xff]
    %v53 = vld [vmem:[%s51 + $0x8] sm:$0xff]
    %v54 = vmax.f32 %v49, %v52
    %v55 = vmax.f32 %v50, %v53
    %s56 = sld [smem:[#allocation2]]
    %s57 = sld [smem:[#allocation2 + $0x1]]
    %v58 = vld [vmem:[%s1] sm:$0xff]
    %v59 = vld [vmem:[%s1 + $0x8] sm:$0xff]
    %v60 = vadd.f32 %v58, 1e-07
    %v61 = vadd.f32 %v59, 1e-07
    %v62 = vsub.f32 1.0, %v58
    %v63 = vsub.f32 1.0, %v59
    %v64 = vadd.f32 %v62, 1e-07
    %v65 = vadd.f32 %v63, 1e-07
    %v66 = vrcp.pop %v64
    %v67 = vmul.f32 %v64, %v66
    %v68 = vsub.f32 1.0, %v67
    %v69 = vmul.f32 %v66, %v68
    %v70 = vadd.f32 %v66, %v69
    %vm71 = vweird.f32 %v64
    %vm72 = vweird.f32 %v66
    %vm73 = vmor %vm71, %vm72
    %v74 = vsel %vm73, %v66, %v70
    %v75 = vand.u32 2147483647, %v64
    %vm76 = vcmp.eq.f32.partialorder %v75, 8.507059e+37
    %v77 = vand.u32 %v64, 2147483648
    %v78 = vor.u32 1.1754944e-38, %v77
    %v79 = vsel %vm76, %v78, %v74
    %v80 = vmul.f32 %v60, %v79
    %v81 = vrcp.pop %v65
    %v82 = vmul.f32 %v65, %v81
    %v83 = vsub.f32 1.0, %v82
    %v84 = vmul.f32 %v81, %v83
    %v85 = vadd.f32 %v81, %v84
    %vm86 = vweird.f32 %v65
    %vm87 = vweird.f32 %v81
    %vm88 = vmor %vm86, %vm87
    %v89 = vsel %vm88, %v81, %v85
    %v90 = vand.u32 2147483647, %v65
    %vm91 = vcmp.eq.f32.partialorder %v90, 8.507059e+37
    %v92 = vand.u32 %v65, 2147483648
    %v93 = vor.u32 1.1754944e-38, %v92
    %v94 = vsel %vm91, %v93, %v89
    %v95 = vmul.f32 %v61, %v94
    %v96 = vlog2.pop %v80
    %v97 = vmul.f32 %v96, 0.6931472
    %v98 = vlog2.pop %v95
    %v99 = vmul.f32 %v98, 0.6931472
    %v100 = vstv %s56
    %v101 = vadd.f32 %v100, %v97
    %v102 = vadd.f32 %v100, %v99
    %v103 = vmul.f32 %v101, 10.0
    %v104 = vmul.f32 %v102, 10.0
    %v105 = vxor.u32 %v103, 2147483648
    %v106 = vxor.u32 %v104, 2147483648
    %v107 = vmul.f32 %v105, 1.442695
    %v108 = vpow.pop %v107
    %v109 = vmul.f32 %v106, 1.442695
    %v110 = vpow.pop %v109
    %v111 = vadd.f32 %v108, 1.0
    %v112 = vadd.f32 %v110, 1.0
    %v113 = vrcp.pop %v111
    %v114 = vmul.f32 %v111, %v113
    %v115 = vsub.f32 1.0, %v114
    %v116 = vmul.f32 %v113, %v115
    %v117 = vadd.f32 %v113, %v116
    %vm118 = vweird.f32 %v111
    %vm119 = vweird.f32 %v113
    %vm120 = vmor %vm118, %vm119
    %v121 = vsel %vm120, %v113, %v117
    %v122 = vand.u32 2147483647, %v111
    %vm123 = vcmp.eq.f32.partialorder %v122, 8.507059e+37
    %v124 = vand.u32 %v111, 2147483648
    %v125 = vor.u32 1.1754944e-38, %v124
    %v126 = vsel %vm123, %v125, %v121
    %v127 = vmul.f32 1.0, %v126
    %v128 = vrcp.pop %v112
    %v129 = vmul.f32 %v112, %v128
    %v130 = vsub.f32 1.0, %v129
    %v131 = vmul.f32 %v128, %v130
    %v132 = vadd.f32 %v128, %v131
    %vm133 = vweird.f32 %v112
    %vm134 = vweird.f32 %v128
    %vm135 = vmor %vm133, %vm134
    %v136 = vsel %vm135, %v128, %v132
    %v137 = vand.u32 2147483647, %v112
    %vm138 = vcmp.eq.f32.partialorder %v137, 8.507059e+37
    %v139 = vand.u32 %v112, 2147483648
    %v140 = vor.u32 1.1754944e-38, %v139
    %v141 = vsel %vm138, %v140, %v136
    %v142 = vmul.f32 1.0, %v141
    %v143 = vsub.f32 1.0, %v127
    %v144 = vsub.f32 1.0, %v142
    %v145 = vstv %s57
    %v146 = vmul.f32 %v143, %v145
    %v147 = vmul.f32 %v144, %v145
    %v148 = vmul.f32 %v54, %v146
    %v149 = vmul.f32 %v55, %v147
    %v150 = vld [vmem:[%s2] sm:$0xff]
    %v151 = vld [vmem:[%s2 + $0x8] sm:$0xff]
    %vm152 = vcmask 130048
    %v154 = vsel %vm152, %v150, 0
    %v157 = vsel %vm152, %v151, 0
    %159 = vmatpush.msra.mxu0 0.0
    %160 = vmatpush.msra.mxu0 0.0
    %161 = vmatpush.msra.mxu0 0.0
    %162 = vmatpush.msra.mxu0 0.0
    %163 = vmatpush.msra.mxu0 0.0
    %164 = vmatpush.msra.mxu0 0.0
    %165 = vmatpush.msra.mxu0 0.0
    %166 = vmatpush.msra.mxu0 0.0
    %167 = vmatpush.msra.mxu0 0.0
    %168 = vmatpush.msra.mxu0 0.0
    %169 = vmatpush.msra.mxu0 0.0
    %170 = vmatpush.msra.mxu0 0.0
    %171 = vmatpush.msra.mxu0 0.0
    %172 = vmatpush.msra.mxu0 0.0
    %173 = vmatpush.msra.mxu0 %v149
    %174 = vmatpush.msra.mxu0 %v148
    %175 = vmatmul.f32.gmra.mxu0 %v154
    %v176 = vpop.f32.mrf.mxu0
    %v177 = vadd.f32 0.0, %v176
    %178 = vmatmul.f32.gmra.mxu0 %v157
    %v179 = vpop.f32.mrf.mxu0
    %v180 = vadd.f32 0.0, %v179
    %181 = vdwg.mxu0
    %182 = vmatpush.msra.mxu0 0.0
    %183 = vmatpush.msra.mxu0 0.0
    %184 = vmatpush.msra.mxu0 0.0
    %185 = vmatpush.msra.mxu0 0.0
    %186 = vmatpush.msra.mxu0 0.0
    %187 = vmatpush.msra.mxu0 0.0
    %188 = vmatpush.msra.mxu0 0.0
    %189 = vmatpush.msra.mxu0 0.0
    %190 = vmatpush.msra.mxu0 0.0
    %191 = vmatpush.msra.mxu0 0.0
    %192 = vmatpush.msra.mxu0 0.0
    %193 = vmatpush.msra.mxu0 0.0
    %194 = vmatpush.msra.mxu0 0.0
    %195 = vmatpush.msra.mxu0 0.0
    %196 = vmatpush.msra.mxu0 %v180
    %197 = vmatpush.msra.mxu0 %v177
    %198 = vmatmul.f32.gmra.mxu0 %v154
    %v199 = vpop.f32.mrf.mxu0
    %v200 = vadd.f32 0.0, %v199
    %201 = vmatmul.f32.gmra.mxu0 %v157
    %v202 = vpop.f32.mrf.mxu0
    %v203 = vadd.f32 0.0, %v202
    %204 = vdwg.mxu0
    %v205 = vmul.f32 %v200, 2.0
    %v206 = vmul.f32 %v203, 2.0
    %v207 = vsub.f32 %v205, %v148
    %v208 = vsub.f32 %v206, %v149
    %211 = vrot.lane.b32.xlu0 %v177, 4
    %v212 = vpop.permute.xlu0 %211
    %213 = vrot.lane.b32.xlu0 %v180, 4
    %v214 = vpop.permute.xlu0 %213
    %219 = vrot.lane.b32.xlu0 %v207, 8
    %v220 = vpop.permute.xlu0 %219
    %221 = vrot.lane.b32.xlu0 %v208, 8
    %v222 = vpop.permute.xlu0 %221
    %vm225 = vcmask 31744
    %v226 = vsel %vm225, %v148, %v212
    %v227 = vsel %vm225, %v149, %v214
    %vm228 = vcmask 64512
    %v229 = vsel %vm228, %v226, %v220
    %v230 = vsel %vm228, %v227, %v222
    %233 = vrot.lane.b32.xlu0 %v148, 124
    %v234 = vpop.permute.xlu0 %233
    %235 = vrot.lane.b32.xlu0 %v149, 124
    %v236 = vpop.permute.xlu0 %235
    %239 = vrot.lane.b32.xlu0 %v207, 4
    %v240 = vpop.permute.xlu0 %239
    %241 = vrot.lane.b32.xlu0 %v208, 4
    %v242 = vpop.permute.xlu0 %241
    %v245 = vsel %vm225, %v234, %v177
    %v246 = vsel %vm225, %v236, %v180
    %v247 = vsel %vm228, %v245, %v240
    %v248 = vsel %vm228, %v246, %v242
    %v249 = vld [vmem:[%s3] sm:$0xff]
    %v250 = vld [vmem:[%s3 + $0x8] sm:$0xf]
    %v251 = vld [vmem:[%s4] sm:$0x1]
    %v253 = vperm.slane %v251, 0
    %vm255 = vcmask 97280
    %v257 = vsel %vm255, %v229, 0
    %v260 = vsel %vm255, %v230, 0
    %v263 = vsel %vm255, %v247, 0
    %v266 = vsel %vm255, %v248, 0
    %vm268 = vcmask 1043456
    %v270 = vsel %vm268, %v250, 0
    %272 = vmatpush.msra.mxu0 0.0
    %273 = vmatpush.msra.mxu0 0.0
    %274 = vmatpush.msra.mxu0 0.0
    %275 = vmatpush.msra.mxu0 0.0
    %276 = vmatpush.msra.mxu0 0.0
    %277 = vmatpush.msra.mxu0 0.0
    %278 = vmatpush.msra.mxu0 0.0
    %279 = vmatpush.msra.mxu0 0.0
    %280 = vmatpush.msra.mxu0 0.0
    %281 = vmatpush.msra.mxu0 0.0
    %282 = vmatpush.msra.mxu0 0.0
    %283 = vmatpush.msra.mxu0 0.0
    %284 = vmatpush.msra.mxu0 0.0
    %285 = vmatpush.msra.mxu0 0.0
    %286 = vmatpush.msra.mxu0 %v270
    %287 = vmatpush.msra.mxu0 %v249
    %288 = vmatmul.f32.gmra.mxu0 %v257
    %v289 = vpop.f32.mrf.mxu0
    %v290 = vadd.f32 %v253, %v289
    %291 = vmatmul.f32.gmra.mxu0 %v260
    %v292 = vpop.f32.mrf.mxu0
    %v293 = vadd.f32 %v253, %v292
    %294 = vmatmul.f32.gmra.mxu0 %v263
    %v295 = vpop.f32.mrf.mxu0
    %v296 = vadd.f32 %v253, %v295
    %297 = vmatmul.f32.gmra.mxu0 %v266
    %v298 = vpop.f32.mrf.mxu0
    %v299 = vadd.f32 %v253, %v298
    %300 = vdwg.mxu0
    %v301 = vsel %vm228, %v290, 0.0
    %v302 = vsel %vm228, %v293, 0.0
    %v303 = vadd.f32 %v301, %v302
    %v304 = vsel %vm228, %v296, 0.0
    %v305 = vadd.f32 %v303, %v304
    %v306 = vsel %vm228, %v299, 0.0
    %v307 = vadd.f32 %v305, %v306
    %v308 = vrot.slane %v307, 4
    %v309 = vadd.f32 %v307, %v308
    %v310 = vrot.slane %v309, 2
    %v311 = vadd.f32 %v309, %v310
    %v312 = vrot.slane %v311, 1
    %v313 = vadd.f32 %v311, %v312
    %v314 = vmul.f32 %v313, 0.03125
    %v315 = vmul.f32 %v290, %v290
    %v316 = vmul.f32 %v293, %v293
    %v317 = vmul.f32 %v296, %v296
    %v318 = vmul.f32 %v299, %v299
    %v319 = vsel %vm228, %v315, 0.0
    %v320 = vsel %vm228, %v316, 0.0
    %v321 = vadd.f32 %v319, %v320
    %v322 = vsel %vm228, %v317, 0.0
    %v323 = vadd.f32 %v321, %v322
    %v324 = vsel %vm228, %v318, 0.0
    %v325 = vadd.f32 %v323, %v324
    %v326 = vrot.slane %v325, 4
    %v327 = vadd.f32 %v325, %v326
    %v328 = vrot.slane %v327, 2
    %v329 = vadd.f32 %v327, %v328
    %v330 = vrot.slane %v329, 1
    %v331 = vadd.f32 %v329, %v330
    %v332 = vmul.f32 %v331, 0.03125
    %v333 = vmul.f32 %v314, %v314
    %v334 = vsub.f32 %v332, %v333
    %v335 = vld [vmem:[%s5] sm:$0x3]
    %v336 = vadd.f32 %v334, 1e-05
    %v337 = vrsqrt.pop %v336
    %v338 = vmul.f32 %v337, %v336
    %v339 = vmul.f32 %v338, %v337
    %v340 = vmul.f32 0.5, %v339
    %v341 = vsub.f32 1.5, %v340
    %v342 = vmul.f32 %v337, %v341
    %vm343 = vweird.f32 %v336
    %vm344 = vweird.f32 %v337
    %vm345 = vmor %vm343, %vm344
    %v346 = vsel %vm345, %v337, %v342
    %v347 = vmul.f32 %v335, %v346
    %v348 = vmul.f32 %v314, %v347
    %v350 = vrot.slane %v348, 7
    %v352 = vsub.f32 %v335, %v350
    %v353 = vperm.slane %v347, 0
    %v354 = vmul.f32 %v290, %v353
    %v355 = vmul.f32 %v293, %v353
    %v356 = vmul.f32 %v296, %v353
    %v357 = vmul.f32 %v299, %v353
    %v358 = vperm.slane %v352, 1
    %v359 = vadd.f32 %v354, %v358
    %v360 = vadd.f32 %v355, %v358
    %v361 = vadd.f32 %v356, %v358
    %v362 = vadd.f32 %v357, %v358
    %v363 = vmax.f32 %v359, 0.0
    %v364 = vmax.f32 %v360, 0.0
    %v365 = vmax.f32 %v361, 0.0
    %v366 = vmax.f32 %v362, 0.0
    %367 = vst.msk [vmem:[%s7] sm:$0xff] %vm228, %v363
    %368 = vst.msk [vmem:[%s7 + $0x8] sm:$0xff] %vm228, %v364
    %369 = vst.msk [vmem:[%s7 + $0x10] sm:$0xff] %vm228, %v365
    %370 = vst.msk [vmem:[%s7 + $0x18] sm:$0xff] %vm228, %v366
    // Predicated region
    $region34: #{bayesian_spherical_cheb_bn_pool.1} parent=1 // pred_check
      _
    $region35: #{bayesian_spherical_cheb_bn_pool.1} parent=1 // pred_check_branch
      %372 = sbr.rel (0) target = $region37
    $region36: #{bayesian_spherical_cheb_bn_pool.1} parent=1 // pred_region
      _
    $region37: #{bayesian_spherical_cheb_bn_pool.1} parent=1 // pred_fallthru
      _
    // Predicated region
    $region38: #{bayesian_spherical_cheb_bn_pool.1} parent=1 // pred_check
      _
    $region39: #{bayesian_spherical_cheb_bn_pool.1} parent=1 // pred_check_branch
      %374 = sbr.rel (0) target = $region41
    $region40: #{bayesian_spherical_cheb_bn_pool.1} parent=1 // pred_region
      _
    $region41: #{bayesian_spherical_cheb_bn_pool.1} parent=1 // pred_fallthru
      _
    %375 = vsyncpa [#allocation3], 1

</llo_original>
